<compile_context>
chip_gen: v5e
topology: v5e:2x2
jax: 0.10.0
libtpu: 0.0.40
codegen_flags: <defaults>
</compile_context>

<pallas_src>
import math

import jax
import jax.numpy as jnp
from jax.experimental import pallas as pl
from jax.experimental.pallas import tpu as pltpu

_LANES = 128
_SUBLANES = 8
_MAX_BLOCK_ROWS = 1024  # (1024,128) f32 tile = 512 KiB per input per step


def _round_up(x, m):
    return ((x + m - 1) // m) * m


def _make_kernel(total_rows, block_rows, has_weight, needs_mask):
    """Fused sum(|source - log(target)| [* weight]) reduction kernel."""

    def kernel(*refs):
        if has_weight:
            s_ref, t_ref, w_ref, o_ref, acc_ref = refs
        else:
            s_ref, t_ref, o_ref, acc_ref = refs
        i = pl.program_id(0)

        @pl.when(i == 0)
        def _():
            acc_ref[...] = jnp.zeros_like(acc_ref)

        s = s_ref[...].astype(jnp.float32)
        t = t_ref[...].astype(jnp.float32)
        d = jnp.abs(s - jnp.log(t))
        if has_weight:
            d = d * w_ref[...].astype(jnp.float32)
        if needs_mask:
            # Last block may overhang the real data; its contents are
            # unspecified, so zero those rows before reducing.
            row_ids = i * block_rows + jax.lax.broadcasted_iota(
                jnp.int32, d.shape, 0)
            d = jnp.where(row_ids < total_rows, d, jnp.float32(0.0))

        acc_ref[...] += jnp.sum(d)

        @pl.when(i == pl.num_programs(0) - 1)
        def _():
            o_ref[...] = acc_ref[...]

    return kernel


def ins_rela_loss(source, target, weight=None):
    source = jnp.asarray(source)
    target = jnp.asarray(target)

    scalar_weight = None
    w_full = None
    if weight is not None:
        weight = jnp.asarray(weight)
        if weight.size == 1:
            scalar_weight = weight.reshape(()).astype(jnp.float32)
        else:
            w_full = jnp.broadcast_to(weight, source.shape)

    n = math.prod(source.shape)
    pad = (-n) % _LANES  # only the tiny lane remainder, never a full-tile pad

    s_flat = jnp.reshape(source, (-1,))
    t_flat = jnp.reshape(target, (-1,))
    if pad:
        # source pad = 0, target pad = 1  =>  |0 - log(1)| = 0 contribution.
        s_flat = jnp.pad(s_flat, (0, pad))
        t_flat = jnp.pad(t_flat, (0, pad), constant_values=1)
    s2 = jnp.reshape(s_flat, (-1, _LANES))
    t2 = jnp.reshape(t_flat, (-1, _LANES))

    has_weight = w_full is not None
    if has_weight:
        w_flat = jnp.reshape(w_full, (-1,))
        if pad:
            w_flat = jnp.pad(w_flat, (0, pad))
        w2 = jnp.reshape(w_flat, (-1, _LANES))

    rows = s2.shape[0]
    block_rows = min(_MAX_BLOCK_ROWS, _round_up(rows, _SUBLANES))
    n_blocks = -(-rows // block_rows)
    needs_mask = (rows % block_rows) != 0

    in_block = pl.BlockSpec((block_rows, _LANES), lambda i: (i, 0))
    out_block = pl.BlockSpec((1, 1), lambda i: (0, 0))

    inputs = (s2, t2, w2) if has_weight else (s2, t2)
    kernel = _make_kernel(rows, block_rows, has_weight, needs_mask)

    loss = pl.pallas_call(
        kernel,
        out_shape=jax.ShapeDtypeStruct((1, 1), jnp.float32),
        grid_spec=pltpu.PrefetchScalarGridSpec(
            num_scalar_prefetch=0,
            grid=(n_blocks,),
            in_specs=[in_block] * len(inputs),
            out_specs=out_block,
            scratch_shapes=[pltpu.VMEM((1, 1), jnp.float32)],
        ),
        compiler_params=pltpu.CompilerParams(
            dimension_semantics=("arbitrary",)),
    )(*inputs)[0, 0]

    if scalar_weight is not None:
        loss = loss * scalar_weight
    return loss


if __name__ == "__main__":
    key = jax.random.PRNGKey(0)
    k1, k2, k3 = jax.random.split(key, 3)
    shape = (2, 4, 16, 16)  # NCHW
    source = jax.random.normal(k1, shape, dtype=jnp.float32)
    # target goes through log() in the reference module -> keep it positive.
    target = jax.random.uniform(k2, shape, dtype=jnp.float32,
                                minval=0.5, maxval=2.0)

    # weight=None path.
    loss = jax.block_until_ready(ins_rela_loss(source, target))
    ref = jnp.sum(jnp.abs(source - jnp.log(target)))
    assert jnp.allclose(loss, ref, rtol=1e-5, atol=1e-4), (loss, ref)

    # Element-wise weight path.
    weight = jax.random.uniform(k3, shape, dtype=jnp.float32)
    loss_w = jax.block_until_ready(ins_rela_loss(source, target, weight))
    ref_w = jnp.sum(jnp.abs(source - jnp.log(target)) * weight)
    assert jnp.allclose(loss_w, ref_w, rtol=1e-5, atol=1e-4), (loss_w, ref_w)

    print("KERNEL_OK")
</pallas_src>

<mosaic_0001>
module attributes {stable_mosaic.version = 11 : i64} {
  func.func @kernel(%arg0: i32, %arg1: memref<16x128xf32, #tpu.memory_space<vmem>>, %arg2: memref<16x128xf32, #tpu.memory_space<vmem>>, %arg3: memref<1x1xf32, #tpu.memory_space<vmem>>, %arg4: memref<1x1xf32, #tpu.memory_space<vmem>>) attributes {dimension_semantics = [#tpu.dimension_semantics<arbitrary>], iteration_bounds = array<i64: 1>, scalar_prefetch = 0 : i64, scratch_operands = 1 : i64, tpu.core_type = #tpu.core_type<tc>, window_params = [{transform_indices = @transform_0, window_bounds = array<i64: 16, 128>}, {transform_indices = @transform_1, window_bounds = array<i64: 16, 128>}, {pipeline_mode = #tpu.pipeline_mode<synchronous>, transform_indices = @transform_2, window_bounds = array<i64: 1, 1>}]} {
    %c0_i32 = arith.constant 0 : i32
    %0 = arith.cmpi eq, %arg0, %c0_i32 : i32
    %1 = arith.extui %0 : i1 to i32
    %c0_i32_0 = arith.constant 0 : i32
    %2 = arith.cmpi ne, %1, %c0_i32_0 : i32
    scf.if %2 {
      %cst_10 = arith.constant 0.000000e+00 : f32
      %19 = vector.broadcast %cst_10 : f32 to vector<1x1xf32>
      %c0_11 = arith.constant 0 : index
      %c0_12 = arith.constant 0 : index
      %20 = vector.load %arg4[%c0_11, %c0_12] : memref<1x1xf32, #tpu.memory_space<vmem>>, vector<1x1xf32>
      tpu.vector_store %arg4[%c0_11, %c0_12], %19 {strides = array<i32>} : memref<1x1xf32, #tpu.memory_space<vmem>>, vector<1x1xf32>,
    } else {
    }
    %c0 = arith.constant 0 : index
    %c0_1 = arith.constant 0 : index
    %3 = vector.load %arg1[%c0, %c0_1] : memref<16x128xf32, #tpu.memory_space<vmem>>, vector<16x128xf32>
    %c0_2 = arith.constant 0 : index
    %c0_3 = arith.constant 0 : index
    %4 = vector.load %arg2[%c0_2, %c0_3] : memref<16x128xf32, #tpu.memory_space<vmem>>, vector<16x128xf32>
    %5 = math.log %4 : vector<16x128xf32>
    %6 = arith.subf %3, %5 : vector<16x128xf32>
    %7 = math.absf %6 : vector<16x128xf32>
    %c0_4 = arith.constant 0 : index
    %c0_5 = arith.constant 0 : index
    %8 = vector.load %arg4[%c0_4, %c0_5] : memref<1x1xf32, #tpu.memory_space<vmem>>, vector<1x1xf32>
    %9 = vector.shape_cast %7 : vector<16x128xf32> to vector<1x16x128xf32>
    %cst = arith.constant dense<0.000000e+00> : vector<1xf32>
    %10 = vector.multi_reduction <add>, %9, %cst [1, 2] : vector<1x16x128xf32> to vector<1xf32>
    %11 = vector.shape_cast %10 : vector<1xf32> to vector<1x1x1xf32>
    %12 = vector.extract %11[0, 0, 0] : f32 from vector<1x1x1xf32>
    %13 = vector.broadcast %12 : f32 to vector<1x1xf32>
    %14 = arith.addf %8, %13 : vector<1x1xf32>
    %c0_6 = arith.constant 0 : index
    %c0_7 = arith.constant 0 : index
    %15 = vector.load %arg4[%c0_6, %c0_7] : memref<1x1xf32, #tpu.memory_space<vmem>>, vector<1x1xf32>
    tpu.vector_store %arg4[%c0_6, %c0_7], %14 {strides = array<i32>} : memref<1x1xf32, #tpu.memory_space<vmem>>, vector<1x1xf32>,
    %c0_i32_8 = arith.constant 0 : i32
    %16 = arith.cmpi eq, %arg0, %c0_i32_8 : i32
    %17 = arith.extui %16 : i1 to i32
    %c0_i32_9 = arith.constant 0 : i32
    %18 = arith.cmpi ne, %17, %c0_i32_9 : i32
    scf.if %18 {
      %c0_10 = arith.constant 0 : index
      %c0_11 = arith.constant 0 : index
      %19 = vector.load %arg4[%c0_10, %c0_11] : memref<1x1xf32, #tpu.memory_space<vmem>>, vector<1x1xf32>
      %c0_12 = arith.constant 0 : index
      %c0_13 = arith.constant 0 : index
      %20 = vector.load %arg3[%c0_12, %c0_13] : memref<1x1xf32, #tpu.memory_space<vmem>>, vector<1x1xf32>
      tpu.vector_store %arg3[%c0_12, %c0_13], %19 {strides = array<i32>} : memref<1x1xf32, #tpu.memory_space<vmem>>, vector<1x1xf32>,
    } else {
    }
    return
  }
  func.func @transform_0(%arg0: i32) -> (i32, i32) {
    %c0_i32 = arith.constant 0 : i32
    %c0_i32_0 = arith.constant 0 : i32
    return %arg0, %c0_i32 : i32, i32
  }
  func.func @transform_1(%arg0: i32) -> (i32, i32) {
    %c0_i32 = arith.constant 0 : i32
    %c0_i32_0 = arith.constant 0 : i32
    return %arg0, %c0_i32 : i32, i32
  }
  func.func @transform_2(%arg0: i32) -> (i32, i32) {
    %c0_i32 = arith.constant 0 : i32
    %c0_i32_0 = arith.constant 0 : i32
    %c0_i32_1 = arith.constant 0 : i32
    return %c0_i32, %c0_i32_0 : i32, i32
  }
}

</mosaic_0001>

<llo_original>
// kernel: tpu_custom_call.1
$region0: #{tpu_custom_call.1}
  #allocation0 [shape = 'u32[]', space=smem, size = 0x4, offset = 0x4, fixed_abs, tag = 'smem constant byte address 0x4 - core index']
  #allocation1 [shape = 'u32[72,128]{1,0:T(1,128)}', space=vmem, size = 0x9000, scoped, tag = 'internal scratch']
  #allocation2 [shape = 'f32[1,1]{1,0:T(1,128)}', space=vmem, size = 0x200, scoped, tag = 'scratch operand']
  %s0 = inlined_call_operand.hbm [shape: f32[16,128], index: 0, kind: input, shape index: {}]
  %s1 = inlined_call_operand.hbm [shape: f32[16,128], index: 1, kind: input, shape index: {}]
  %s2 = inlined_call_operand.hbm [shape: f32[1,1], index: 2, kind: output, shape index: {}]
  %s3 = sld [smem:[#allocation0]]
  $region34: #{tpu_custom_call.1} parent=0
    _
  %s5 = ssub.s32 1, %s3
  %s6 = scalar_select 0, %s5, %s3
  $region1: #{tpu_custom_call.1} parent=0
    #allocation3 [shape = 'u8[8192]{0}', space=vmem, size = 0x2000, scoped, tag = 'input window, operand 0, single buffered']
    #allocation4 [shape = 's32[1]{0}', space=sflag, size = 0x4, scoped, tag = 'scoped memory for tpu_custom_call.1']
    #allocation5 [shape = 's32[1]{0}', space=sflag, size = 0x4, scoped, tag = 'scoped memory for tpu_custom_call.1']
    #allocation6 [shape = 'u8[8192]{0}', space=vmem, size = 0x2000, scoped, tag = 'input window, operand 1, single buffered']
    #allocation7 [shape = 's32[1]{0}', space=sflag, size = 0x4, scoped, tag = 'scoped memory for tpu_custom_call.1']
    #allocation8 [shape = 'u8[512]{0}', space=vmem, size = 0x400, scoped, tag = 'output window, operand 0, single buffered']
    %7 = vsyncpa [#allocation4], 0
    %8 = vsyncpa [#allocation7], 0
    %9 = vsyncpa [#allocation5], 0
    // Predicated region
    $region2: #{tpu_custom_call.1} parent=1 // pred_check
      _
    $region3: #{tpu_custom_call.1} parent=1 // pred_check_branch
      %11 = sbr.rel (0) target = $region5
    $region4: #{tpu_custom_call.1} parent=1 // pred_region
      %13 = vsyncadd [#allocation4], 0
      %s14 = sshll.u32 %s0, 4
      %s15 = int_to_ptr.hbm [resolvable:$true] %s14
      %s16 = sshll.u32 [#allocation3], 4
      %s17 = int_to_ptr.vmem [resolvable:$true] %s16
      %22 = dma.hbm_to_vmem [thread:$0]  %s15, 256, %s17, [#allocation4], 128, 128, 8
    $region5: #{tpu_custom_call.1} parent=1 // pred_fallthru
      _
    // Predicated region
    $region6: #{tpu_custom_call.1} parent=1 // pred_check
      _
    $region7: #{tpu_custom_call.1} parent=1 // pred_check_branch
      %24 = sbr.rel (0) target = $region9
    $region8: #{tpu_custom_call.1} parent=1 // pred_region
      %26 = vsyncadd [#allocation7], 0
      %s27 = sshll.u32 %s1, 4
      %s28 = int_to_ptr.hbm [resolvable:$true] %s27
      %s29 = sshll.u32 [#allocation6], 4
      %s30 = int_to_ptr.vmem [resolvable:$true] %s29
      %35 = dma.hbm_to_vmem [thread:$0]  %s28, 256, %s30, [#allocation7], 128, 128, 8
    $region9: #{tpu_custom_call.1} parent=1 // pred_fallthru
      _
    // Predicated region
    $region10: #{tpu_custom_call.1} parent=1 // pred_check
      _
    $region11: #{tpu_custom_call.1} parent=1 // pred_check_branch
      %37 = sbr.rel (0) target = $region13
    $region12: #{tpu_custom_call.1} parent=1 // pred_region
      %39 = dma.done [#allocation4], 256
    $region13: #{tpu_custom_call.1} parent=1 // pred_fallthru
      _
    // Predicated region
    $region14: #{tpu_custom_call.1} parent=1 // pred_check
      _
    $region15: #{tpu_custom_call.1} parent=1 // pred_check_branch
      %41 = sbr.rel (0) target = $region17
    $region16: #{tpu_custom_call.1} parent=1 // pred_region
      %43 = dma.done [#allocation7], 256
    $region17: #{tpu_custom_call.1} parent=1 // pred_fallthru
      _
    %p44 = scmp.eq.s32.totalorder 0, 0
    // Predicated region
    $region18: #{tpu_custom_call.1} parent=1 // pred_check
      %p45 = pneg %p44
    $region19: #{tpu_custom_call.1} parent=1 // pred_check_branch
      %47 = sbr.rel (%p45) target = $region21
    $region20: #{tpu_custom_call.1} parent=1 // pred_region
      %vm48 = vcmask 0
      %49 = vst.msk [vmem:[#allocation2] sm:$0x1] %vm48, 0.0
    $region21: #{tpu_custom_call.1} parent=1 // pred_fallthru
      _
    %v50 = vld [vmem:[#allocation3] sm:$0xff]
    %v51 = vld [vmem:[#allocation3 + $0x8] sm:$0xff]
    %v52 = vld [vmem:[#allocation6] sm:$0xff]
    %v53 = vld [vmem:[#allocation6 + $0x8] sm:$0xff]
    %v54 = vlog2.pop %v52
    %v55 = vmul.f32 %v54, 0.6931472
    %v56 = vlog2.pop %v53
    %v57 = vmul.f32 %v56, 0.6931472
    %v58 = vsub.f32 %v50, %v55
    %v59 = vsub.f32 %v51, %v57
    %v60 = vand.u32 2147483647, %v58
    %v61 = vand.u32 2147483647, %v59
    %v62 = vld [vmem:[#allocation2] sm:$0x1]
    %v63 = vadd.f32 %v60, %v61
    %64 = vadd.xlane.f32.xlu0 %v63
    %v65 = vpop.xlane.xlu0 %64
    %v66 = vrot.slane %v65, 4
    %v67 = vadd.f32 %v65, %v66
    %v68 = vrot.slane %v67, 2
    %v69 = vadd.f32 %v67, %v68
    %v70 = vrot.slane %v69, 1
    %v71 = vadd.f32 %v69, %v70
    %s72 = vtos %v71
    %v73 = vstv %s72
    %v74 = vadd.f32 %v62, %v73
    %vm75 = vcmask 0
    %76 = vst.msk [vmem:[#allocation2] sm:$0x1] %vm75, %v74
    // Predicated region
    $region22: #{tpu_custom_call.1} parent=1 // pred_check
      %p77 = pneg %p44
    $region23: #{tpu_custom_call.1} parent=1 // pred_check_branch
      %79 = sbr.rel (%p77) target = $region25
    $region24: #{tpu_custom_call.1} parent=1 // pred_region
      %v80 = vld [vmem:[#allocation2] sm:$0x1]
      %81 = vst.msk [vmem:[#allocation8] sm:$0x1] %vm75, %v80
    $region25: #{tpu_custom_call.1} parent=1 // pred_fallthru
      _
    // Predicated region
    $region26: #{tpu_custom_call.1} parent=1 // pred_check
      _
    $region27: #{tpu_custom_call.1} parent=1 // pred_check_branch
      %83 = sbr.rel (0) target = $region29
    $region28: #{tpu_custom_call.1} parent=1 // pred_region
      %85 = vsyncadd [#allocation5], 0
      %s87 = sshll.u32 [#allocation8], 4
      %s88 = int_to_ptr.vmem [resolvable:$true] %s87
      %s89 = sshll.u32 %s2, 4
      %s90 = int_to_ptr.hbm [resolvable:$true] %s89
      %92 = dma.vmem_to_hbm [thread:$0]  %s88, 16, %s90, [#allocation5]
    $region29: #{tpu_custom_call.1} parent=1 // pred_fallthru
      _
    // Predicated region
    $region30: #{tpu_custom_call.1} parent=1 // pred_check
      _
    $region31: #{tpu_custom_call.1} parent=1 // pred_check_branch
      %94 = sbr.rel (0) target = $region33
    $region32: #{tpu_custom_call.1} parent=1 // pred_region
      %96 = dma.done [#allocation5], 16
    $region33: #{tpu_custom_call.1} parent=1 // pred_fallthru
      _
    %97 = vsyncpa [#allocation4], 1
    %98 = vsyncpa [#allocation7], 1
    %99 = vsyncpa [#allocation5], 1

</llo_original>
